<compile_context>
chip_gen: v5e
topology: v5e:2x2
jax: 0.10.0
libtpu: 0.0.40
codegen_flags: <defaults>
</compile_context>

<pallas_src>
import jax
import jax.numpy as jnp
from jax.experimental import pallas as pl
from jax.experimental.pallas import tpu as pltpu

STATE_SIZE = 4      # CartPole-v0 observation size
ACTION_SIZE = 2     # unused by Critic.forward, kept for parity with __init__
H1, H2, OUT = 128, 256, 1

DEFAULT_BLOCK_B = 512   # rows per batch block (sized for v7x's smaller VMEM too)


def _round_up(x, m):
    return ((x + m - 1) // m) * m


def _critic_kernel(x_ref, w1_ref, b1_ref, w2_ref, b2_ref, w3_ref, b3_ref, o_ref):
    x = x_ref[...]                                   # [TB, 4]   f32
    w1 = w1_ref[...]                                 # [4, 128]  f32

    # ---- layer 1 on the VPU: K=4 contraction as 4 broadcast FMAs ----
    h1 = jnp.broadcast_to(b1_ref[...], (x.shape[0], H1))     # [TB, 128]
    for k in range(STATE_SIZE):                              # static unroll
        h1 = h1 + x[:, k:k + 1] * w1[k:k + 1, :]
    h1 = jnp.maximum(h1, 0.0)                                # [TB, 128] f32

    # ---- layer 2 on the MXU: bf16 operands, f32 accumulation ----
    h2 = jnp.dot(h1.astype(jnp.bfloat16), w2_ref[...],
                 preferred_element_type=jnp.float32) + b2_ref[...]
    h2 = jnp.maximum(h2, 0.0)                                # [TB, 256] f32

    # ---- layer 3 (N=1) on VPU + XLU: row mul + lane reduction ----
    v = jnp.sum(h2 * w3_ref[...], axis=-1, keepdims=True) + b3_ref[0, 0]
    o_ref[...] = v.astype(o_ref.dtype)                       # [TB, 1]


def critic_forward(state, params, *, block_b=DEFAULT_BLOCK_B):
    """state: [B, STATE_SIZE] f32; params: dict of (w1,b1,w2,b2,w3,b3) in f32."""
    B = state.shape[0]
    w1, b1, w2, b2, w3, b3 = (params[k] for k in ("w1", "b1", "w2", "b2", "w3", "b3"))

    # bf16 weights for the MXU matmul (native on v6e/v7x, fine on v5e MXU).
    w2_bf16 = w2.astype(jnp.bfloat16)

    # Pick a batch block: at most `block_b`, at least a sublane multiple (8).
    tb = block_b if B >= block_b else _round_up(B, 8)
    b_pad = _round_up(B, tb)
    if b_pad != B:
        state = jnp.pad(state, ((0, b_pad - B), (0, 0)))
    grid = (b_pad // tb,)

    out = pl.pallas_call(
        _critic_kernel,
        out_shape=jax.ShapeDtypeStruct((b_pad, OUT), jnp.float32),
        grid=grid,
        in_specs=[
            pl.BlockSpec((tb, STATE_SIZE), lambda i: (i, 0)),        # state: blocked on B
            pl.BlockSpec((STATE_SIZE, H1), lambda i: (0, 0)),        # w1: resident
            pl.BlockSpec((1, H1), lambda i: (0, 0)),                 # b1: resident
            pl.BlockSpec((H1, H2), lambda i: (0, 0)),                # w2 (bf16): resident
            pl.BlockSpec((1, H2), lambda i: (0, 0)),                 # b2: resident
            pl.BlockSpec((1, H2), lambda i: (0, 0)),                 # w3 row: resident
            pl.BlockSpec((1, 1), lambda i: (0, 0),
                         memory_space=pltpu.MemorySpace.SMEM),       # b3 scalar in SMEM
        ],
        out_specs=pl.BlockSpec((tb, OUT), lambda i: (i, 0)),
        compiler_params=pltpu.CompilerParams(
            dimension_semantics=("parallel",),        # megacore-shard the batch grid
            vmem_limit_bytes=32 * 1024 * 1024,        # generous headroom for double-buffering
        ),
    )(state, w1, b1, w2_bf16, b2, w3, b3)

    return out[:B]


def init_critic_params(key, state_size=STATE_SIZE):
    """Deterministic init mirroring torch.nn.Linear default (U[-1/sqrt(fan_in), +1/sqrt(fan_in)]).
    w1/w2 stored as [in, out]; w3 stored as a [1, out_in] row; biases as [1, out]."""
    ks = jax.random.split(key, 6)

    def lin(kw, kb, fan_in, fan_out):
        bound = 1.0 / (fan_in ** 0.5)
        w = jax.random.uniform(kw, (fan_in, fan_out), jnp.float32, -bound, bound)
        b = jax.random.uniform(kb, (1, fan_out), jnp.float32, -bound, bound)
        return w, b

    w1, b1 = lin(ks[0], ks[1], state_size, H1)
    w2, b2 = lin(ks[2], ks[3], H1, H2)
    w3_col, b3 = lin(ks[4], ks[5], H2, OUT)
    w3 = w3_col.T                              # [1, H2] row for the VPU reduction path
    b3 = b3.reshape(1, 1)                      # [1, 1] scalar for SMEM
    return {"w1": w1, "b1": b1, "w2": w2, "b2": b2, "w3": w3, "b3": b3}


def critic_reference(state, p):
    """Pure-JAX reference matching the kernel's numerics (bf16 operands into the
    single MXU matmul, f32 accumulation and f32 elementwise everywhere else)."""
    h1 = jnp.maximum(state @ p["w1"] + p["b1"], 0.0)
    h1_q = h1.astype(jnp.bfloat16).astype(jnp.float32)
    w2_q = p["w2"].astype(jnp.bfloat16).astype(jnp.float32)
    h2 = jnp.maximum(h1_q @ w2_q + p["b2"], 0.0)
    return jnp.sum(h2 * p["w3"], axis=-1, keepdims=True) + p["b3"]


if __name__ == "__main__":
    key = jax.random.PRNGKey(0)
    k_param, k_state = jax.random.split(key)

    params = init_critic_params(k_param)
    batch = 2
    state = jax.random.normal(k_state, (batch, STATE_SIZE), jnp.float32)

    value = critic_forward(state, params)
    jax.block_until_ready(value)

    ref = critic_reference(state, params)
    assert value.shape == (batch, 1)
    assert jnp.allclose(value, ref, atol=1e-4, rtol=1e-4), (value, ref)

    print("KERNEL_OK")
</pallas_src>

<mosaic_0001>
module attributes {stable_mosaic.version = 11 : i64} {
  func.func @_critic_kernel(%arg0: i32, %arg1: memref<8x4xf32, #tpu.memory_space<vmem>>, %arg2: memref<4x128xf32, #tpu.memory_space<vmem>>, %arg3: memref<1x128xf32, #tpu.memory_space<vmem>>, %arg4: memref<128x256xbf16, #tpu.memory_space<vmem>>, %arg5: memref<1x256xf32, #tpu.memory_space<vmem>>, %arg6: memref<1x256xf32, #tpu.memory_space<vmem>>, %arg7: memref<1x1xf32, #tpu.memory_space<smem>>, %arg8: memref<8x1xf32, #tpu.memory_space<vmem>>) attributes {dimension_semantics = [#tpu.dimension_semantics<parallel>], iteration_bounds = array<i64: 1>, scalar_prefetch = 0 : i64, scratch_operands = 0 : i64, tpu.core_type = #tpu.core_type<tc>, window_params = [{transform_indices = @transform_0, window_bounds = array<i64: 8, 4>}, {pipeline_mode = #tpu.pipeline_mode<synchronous>, transform_indices = @transform_1, window_bounds = array<i64: 4, 128>}, {pipeline_mode = #tpu.pipeline_mode<synchronous>, transform_indices = @transform_2, window_bounds = array<i64: 1, 128>}, {pipeline_mode = #tpu.pipeline_mode<synchronous>, transform_indices = @transform_3, window_bounds = array<i64: 128, 256>}, {pipeline_mode = #tpu.pipeline_mode<synchronous>, transform_indices = @transform_4, window_bounds = array<i64: 1, 256>}, {pipeline_mode = #tpu.pipeline_mode<synchronous>, transform_indices = @transform_5, window_bounds = array<i64: 1, 256>}, {transform_indices = @transform_6, window_bounds = array<i64: 1, 1>}, {transform_indices = @transform_7, window_bounds = array<i64: 8, 1>}]} {
    %c0 = arith.constant 0 : index
    %c0_0 = arith.constant 0 : index
    %0 = vector.load %arg1[%c0, %c0_0] : memref<8x4xf32, #tpu.memory_space<vmem>>, vector<8x4xf32>
    %c0_1 = arith.constant 0 : index
    %c0_2 = arith.constant 0 : index
    %1 = vector.load %arg2[%c0_1, %c0_2] : memref<4x128xf32, #tpu.memory_space<vmem>>, vector<4x128xf32>
    %c0_3 = arith.constant 0 : index
    %c0_4 = arith.constant 0 : index
    %2 = vector.load %arg3[%c0_3, %c0_4] : memref<1x128xf32, #tpu.memory_space<vmem>>, vector<1x128xf32>
    %3 = vector.shape_cast %2 : vector<1x128xf32> to vector<1x128xf32>
    %4 = vector.broadcast %3 : vector<1x128xf32> to vector<8x128xf32>
    %5 = vector.extract_strided_slice %0 {offsets = [0, 0], sizes = [8, 1], strides = [1, 1]} : vector<8x4xf32> to vector<8x1xf32>
    %6 = vector.extract_strided_slice %1 {offsets = [0, 0], sizes = [1, 128], strides = [1, 1]} : vector<4x128xf32> to vector<1x128xf32>
    %7 = vector.broadcast %5 : vector<8x1xf32> to vector<8x128xf32>
    %8 = vector.broadcast %6 : vector<1x128xf32> to vector<8x128xf32>
    %9 = arith.mulf %7, %8 : vector<8x128xf32>
    %10 = arith.addf %4, %9 : vector<8x128xf32>
    %11 = vector.extract_strided_slice %0 {offsets = [0, 1], sizes = [8, 1], strides = [1, 1]} : vector<8x4xf32> to vector<8x1xf32>
    %12 = vector.extract_strided_slice %1 {offsets = [1, 0], sizes = [1, 128], strides = [1, 1]} : vector<4x128xf32> to vector<1x128xf32>
    %13 = vector.broadcast %11 : vector<8x1xf32> to vector<8x128xf32>
    %14 = vector.broadcast %12 : vector<1x128xf32> to vector<8x128xf32>
    %15 = arith.mulf %13, %14 : vector<8x128xf32>
    %16 = arith.addf %10, %15 : vector<8x128xf32>
    %17 = vector.extract_strided_slice %0 {offsets = [0, 2], sizes = [8, 1], strides = [1, 1]} : vector<8x4xf32> to vector<8x1xf32>
    %18 = vector.extract_strided_slice %1 {offsets = [2, 0], sizes = [1, 128], strides = [1, 1]} : vector<4x128xf32> to vector<1x128xf32>
    %19 = vector.broadcast %17 : vector<8x1xf32> to vector<8x128xf32>
    %20 = vector.broadcast %18 : vector<1x128xf32> to vector<8x128xf32>
    %21 = arith.mulf %19, %20 : vector<8x128xf32>
    %22 = arith.addf %16, %21 : vector<8x128xf32>
    %23 = vector.extract_strided_slice %0 {offsets = [0, 3], sizes = [8, 1], strides = [1, 1]} : vector<8x4xf32> to vector<8x1xf32>
    %24 = vector.extract_strided_slice %1 {offsets = [3, 0], sizes = [1, 128], strides = [1, 1]} : vector<4x128xf32> to vector<1x128xf32>
    %25 = vector.broadcast %23 : vector<8x1xf32> to vector<8x128xf32>
    %26 = vector.broadcast %24 : vector<1x128xf32> to vector<8x128xf32>
    %27 = arith.mulf %25, %26 : vector<8x128xf32>
    %28 = arith.addf %22, %27 : vector<8x128xf32>
    %cst = arith.constant 0.000000e+00 : f32
    %29 = vector.broadcast %cst : f32 to vector<8x128xf32>
    %30 = arith.maximumf %28, %29 : vector<8x128xf32>
    %31 = arith.truncf %30 : vector<8x128xf32> to vector<8x128xbf16>
    %c0_5 = arith.constant 0 : index
    %c0_6 = arith.constant 0 : index
    %32 = vector.load %arg4[%c0_5, %c0_6] : memref<128x256xbf16, #tpu.memory_space<vmem>>, vector<128x256xbf16>
    %cst_7 = arith.constant dense<0.000000e+00> : vector<8x256xf32>
    %33 = tpu.matmul %31, %32, %cst_7 {dimension_numbers = #tpu.dot_dimension_numbers<[1], [0], [0], [1], [0, 0, 1, 1], [], []>} : vector<8x128xbf16>, vector<128x256xbf16>, vector<8x256xf32> -> vector<8x256xf32>
    %c0_8 = arith.constant 0 : index
    %c0_9 = arith.constant 0 : index
    %34 = vector.load %arg5[%c0_8, %c0_9] : memref<1x256xf32, #tpu.memory_space<vmem>>, vector<1x256xf32>
    %35 = vector.broadcast %34 : vector<1x256xf32> to vector<8x256xf32>
    %36 = arith.addf %33, %35 : vector<8x256xf32>
    %cst_10 = arith.constant 0.000000e+00 : f32
    %37 = vector.broadcast %cst_10 : f32 to vector<8x256xf32>
    %38 = arith.maximumf %36, %37 : vector<8x256xf32>
    %c0_11 = arith.constant 0 : index
    %c0_12 = arith.constant 0 : index
    %39 = vector.load %arg6[%c0_11, %c0_12] : memref<1x256xf32, #tpu.memory_space<vmem>>, vector<1x256xf32>
    %40 = vector.broadcast %39 : vector<1x256xf32> to vector<8x256xf32>
    %41 = arith.mulf %38, %40 : vector<8x256xf32>
    %cst_13 = arith.constant dense<0.000000e+00> : vector<8xf32>
    %42 = vector.multi_reduction <add>, %41, %cst_13 [1] : vector<8x256xf32> to vector<8xf32>
    %43 = vector.shape_cast %42 : vector<8xf32> to vector<8x1xf32>
    %c0_14 = arith.constant 0 : index
    %c0_15 = arith.constant 0 : index
    %44 = memref.load %arg7[%c0_14, %c0_15] : memref<1x1xf32, #tpu.memory_space<smem>>
    %45 = vector.broadcast %44 : f32 to vector<8x1xf32>
    %46 = arith.addf %43, %45 : vector<8x1xf32>
    %c0_16 = arith.constant 0 : index
    %c0_17 = arith.constant 0 : index
    %47 = vector.load %arg8[%c0_16, %c0_17] : memref<8x1xf32, #tpu.memory_space<vmem>>, vector<8x1xf32>
    tpu.vector_store %arg8[%c0_16, %c0_17], %46 {strides = array<i32>} : memref<8x1xf32, #tpu.memory_space<vmem>>, vector<8x1xf32>,
    return
  }
  func.func @transform_0(%arg0: i32) -> (i32, i32) {
    %c0_i32 = arith.constant 0 : i32
    %c0_i32_0 = arith.constant 0 : i32
    return %arg0, %c0_i32 : i32, i32
  }
  func.func @transform_1(%arg0: i32) -> (i32, i32) {
    %c0_i32 = arith.constant 0 : i32
    %c0_i32_0 = arith.constant 0 : i32
    %c0_i32_1 = arith.constant 0 : i32
    return %c0_i32, %c0_i32_0 : i32, i32
  }
  func.func @transform_2(%arg0: i32) -> (i32, i32) {
    %c0_i32 = arith.constant 0 : i32
    %c0_i32_0 = arith.constant 0 : i32
    %c0_i32_1 = arith.constant 0 : i32
    return %c0_i32, %c0_i32_0 : i32, i32
  }
  func.func @transform_3(%arg0: i32) -> (i32, i32) {
    %c0_i32 = arith.constant 0 : i32
    %c0_i32_0 = arith.constant 0 : i32
    %c0_i32_1 = arith.constant 0 : i32
    return %c0_i32, %c0_i32_0 : i32, i32
  }
  func.func @transform_4(%arg0: i32) -> (i32, i32) {
    %c0_i32 = arith.constant 0 : i32
    %c0_i32_0 = arith.constant 0 : i32
    %c0_i32_1 = arith.constant 0 : i32
    return %c0_i32, %c0_i32_0 : i32, i32
  }
  func.func @transform_5(%arg0: i32) -> (i32, i32) {
    %c0_i32 = arith.constant 0 : i32
    %c0_i32_0 = arith.constant 0 : i32
    %c0_i32_1 = arith.constant 0 : i32
    return %c0_i32, %c0_i32_0 : i32, i32
  }
  func.func @transform_6(%arg0: i32) -> (i32, i32) {
    %c0_i32 = arith.constant 0 : i32
    %c0_i32_0 = arith.constant 0 : i32
    %c0_i32_1 = arith.constant 0 : i32
    return %c0_i32, %c0_i32_0 : i32, i32
  }
  func.func @transform_7(%arg0: i32) -> (i32, i32) {
    %c0_i32 = arith.constant 0 : i32
    %c0_i32_0 = arith.constant 0 : i32
    return %arg0, %c0_i32 : i32, i32
  }
}

</mosaic_0001>

<llo_original>
// kernel: tpu_custom_call.1
$region0: #{tpu_custom_call.1}
  #allocation0 [shape = 'u32[]', space=smem, size = 0x4, offset = 0x4, fixed_abs, tag = 'smem constant byte address 0x4 - core index']
  #allocation1 [shape = 'u32[72,128]{1,0:T(1,128)}', space=vmem, size = 0x9000, scoped, tag = 'internal scratch']
  #allocation2 [shape = 'f32[1,1]{1,0:T(1,128)S(6)}', space=smem, size = 0x200, scoped, tag = 'scoped memory for tpu_custom_call.1']
  %s0 = inlined_call_operand.vmem [shape: f32[8,4], index: 0, kind: input, shape index: {}]
  %s1 = inlined_call_operand.vmem [shape: f32[4,128], index: 1, kind: input, shape index: {}]
  %s2 = inlined_call_operand.vmem [shape: f32[1,128], index: 2, kind: input, shape index: {}]
  %s3 = inlined_call_operand.hbm [shape: bf16[128,256], index: 3, kind: input, shape index: {}]
  %s4 = inlined_call_operand.vmem [shape: f32[1,256], index: 4, kind: input, shape index: {}]
  %s5 = inlined_call_operand.vmem [shape: f32[1,256], index: 5, kind: input, shape index: {}]
  %s6 = inlined_call_operand.<no memory space> [shape: f32[1,1], index: 6, kind: input, shape index: {}]
  %s7 = inlined_call_operand.vmem [shape: f32[8,1], index: 7, kind: output, shape index: {}]
  %s8 = sld [smem:[#allocation0]]
  $region42: #{tpu_custom_call.1} parent=0
    _
  %s10 = ssub.s32 1, %s8
  %s11 = scalar_select 0, %s10, %s8
  %12 = sst [smem:[#allocation2]] %s6
  $region1: #{tpu_custom_call.1} parent=0
    #allocation3 [shape = 'u8[65536]{0}', space=vmem, size = 0x10000, scoped, tag = 'input window, operand 3, single buffered']
    #allocation4 [shape = 's32[1]{0}', space=sflag, size = 0x4, scoped, tag = 'scoped memory for tpu_custom_call.1']
    %13 = vsyncpa [#allocation4], 0
    // Predicated region
    $region2: #{tpu_custom_call.1} parent=1 // pred_check
      _
    $region3: #{tpu_custom_call.1} parent=1 // pred_check_branch
      %15 = sbr.rel (0) target = $region5
    $region4: #{tpu_custom_call.1} parent=1 // pred_region
      _
    $region5: #{tpu_custom_call.1} parent=1 // pred_fallthru
      _
    // Predicated region
    $region6: #{tpu_custom_call.1} parent=1 // pred_check
      _
    $region7: #{tpu_custom_call.1} parent=1 // pred_check_branch
      %17 = sbr.rel (0) target = $region9
    $region8: #{tpu_custom_call.1} parent=1 // pred_region
      _
    $region9: #{tpu_custom_call.1} parent=1 // pred_fallthru
      _
    // Predicated region
    $region10: #{tpu_custom_call.1} parent=1 // pred_check
      _
    $region11: #{tpu_custom_call.1} parent=1 // pred_check_branch
      %19 = sbr.rel (0) target = $region13
    $region12: #{tpu_custom_call.1} parent=1 // pred_region
      _
    $region13: #{tpu_custom_call.1} parent=1 // pred_fallthru
      _
    // Predicated region
    $region14: #{tpu_custom_call.1} parent=1 // pred_check
      _
    $region15: #{tpu_custom_call.1} parent=1 // pred_check_branch
      %21 = sbr.rel (0) target = $region17
    $region16: #{tpu_custom_call.1} parent=1 // pred_region
      %23 = vsyncadd [#allocation4], 0
      %s24 = sshll.u32 %s3, 4
      %s25 = int_to_ptr.hbm [resolvable:$true] %s24
      %s26 = sshll.u32 [#allocation3], 4
      %s27 = int_to_ptr.vmem [resolvable:$true] %s26
      %32 = dma.hbm_to_vmem [thread:$0]  %s25, 2048, %s27, [#allocation4], 128, 128, 8
    $region17: #{tpu_custom_call.1} parent=1 // pred_fallthru
      _
    // Predicated region
    $region18: #{tpu_custom_call.1} parent=1 // pred_check
      _
    $region19: #{tpu_custom_call.1} parent=1 // pred_check_branch
      %34 = sbr.rel (0) target = $region21
    $region20: #{tpu_custom_call.1} parent=1 // pred_region
      _
    $region21: #{tpu_custom_call.1} parent=1 // pred_fallthru
      _
    // Predicated region
    $region22: #{tpu_custom_call.1} parent=1 // pred_check
      _
    $region23: #{tpu_custom_call.1} parent=1 // pred_check_branch
      %36 = sbr.rel (0) target = $region25
    $region24: #{tpu_custom_call.1} parent=1 // pred_region
      _
    $region25: #{tpu_custom_call.1} parent=1 // pred_fallthru
      _
    // Predicated region
    $region26: #{tpu_custom_call.1} parent=1 // pred_check
      _
    $region27: #{tpu_custom_call.1} parent=1 // pred_check_branch
      %38 = sbr.rel (0) target = $region29
    $region28: #{tpu_custom_call.1} parent=1 // pred_region
      _
    $region29: #{tpu_custom_call.1} parent=1 // pred_fallthru
      _
    // Predicated region
    $region30: #{tpu_custom_call.1} parent=1 // pred_check
      _
    $region31: #{tpu_custom_call.1} parent=1 // pred_check_branch
      %40 = sbr.rel (0) target = $region33
    $region32: #{tpu_custom_call.1} parent=1 // pred_region
      %42 = dma.done [#allocation4], 2048
    $region33: #{tpu_custom_call.1} parent=1 // pred_fallthru
      _
    %v43 = vld [vmem:[%s0] sm:$0xff]
    %v44 = vld [vmem:[%s1] sm:$0xf]
    %v45 = vld [vmem:[%s2] sm:$0x1]
    %v47 = vperm.slane %v45, 0
    %50 = vset.pattern.permute.xlu0 0
    %51 = vperm.xlu0 %50, %v43
    %v52 = vpop.permute.xlu0 %51
    %v54 = vperm.slane %v44, 0
    %v55 = vmul.f32 %v52, %v54
    %v56 = vadd.f32 %v47, %v55
    %57 = vset.pattern.permute.xlu0 1
    %58 = vperm.xlu0 %57, %v43
    %v59 = vpop.permute.xlu0 %58
    %v61 = vperm.slane %v44, 1
    %v62 = vmul.f32 %v59, %v61
    %v63 = vadd.f32 %v56, %v62
    %64 = vset.pattern.permute.xlu0 2
    %65 = vperm.xlu0 %64, %v43
    %v66 = vpop.permute.xlu0 %65
    %v68 = vperm.slane %v44, 2
    %v69 = vmul.f32 %v66, %v68
    %v70 = vadd.f32 %v63, %v69
    %71 = vset.pattern.permute.xlu0 3
    %72 = vperm.xlu0 %71, %v43
    %v73 = vpop.permute.xlu0 %72
    %v75 = vperm.slane %v44, 3
    %v76 = vmul.f32 %v73, %v75
    %v77 = vadd.f32 %v70, %v76
    %v78 = vmax.f32 %v77, 0.0
    %v79 = vpack.c.bf16 %v78, %v78
    %v80 = vld [vmem:[#allocation3] sm:$0xff]
    %v81 = vld [vmem:[#allocation3 + $0x8] sm:$0xff]
    %v82 = vld [vmem:[#allocation3 + $0x10] sm:$0xff]
    %v83 = vld [vmem:[#allocation3 + $0x18] sm:$0xff]
    %v84 = vld [vmem:[#allocation3 + $0x20] sm:$0xff]
    %v85 = vld [vmem:[#allocation3 + $0x28] sm:$0xff]
    %v86 = vld [vmem:[#allocation3 + $0x30] sm:$0xff]
    %v87 = vld [vmem:[#allocation3 + $0x38] sm:$0xff]
    %v88 = vld [vmem:[#allocation3 + $0x40] sm:$0xff]
    %v89 = vld [vmem:[#allocation3 + $0x48] sm:$0xff]
    %v90 = vld [vmem:[#allocation3 + $0x50] sm:$0xff]
    %v91 = vld [vmem:[#allocation3 + $0x58] sm:$0xff]
    %v92 = vld [vmem:[#allocation3 + $0x60] sm:$0xff]
    %v93 = vld [vmem:[#allocation3 + $0x68] sm:$0xff]
    %v94 = vld [vmem:[#allocation3 + $0x70] sm:$0xff]
    %v95 = vld [vmem:[#allocation3 + $0x78] sm:$0xff]
    %v96 = vld [vmem:[%s4] sm:$0x3]
    %v98 = vperm.slane %v96, 0
    %v99 = vperm.slane %v96, 1
    %v118 = vunpack.c.l.b16 %v80
    %v119 = vunpack.c.h.b16 %v80
    %v120 = vunpack.c.l.b16 %v81
    %v121 = vunpack.c.h.b16 %v81
    %v122 = vunpack.c.l.b16 %v82
    %v123 = vunpack.c.h.b16 %v82
    %v124 = vunpack.c.l.b16 %v83
    %v125 = vunpack.c.h.b16 %v83
    %v126 = vunpack.c.l.b16 %v84
    %v127 = vunpack.c.h.b16 %v84
    %v128 = vunpack.c.l.b16 %v85
    %v129 = vunpack.c.h.b16 %v85
    %v130 = vunpack.c.l.b16 %v86
    %v131 = vunpack.c.h.b16 %v86
    %v132 = vunpack.c.l.b16 %v87
    %v133 = vunpack.c.h.b16 %v87
    %v134 = vunpack.c.l.b16 %v88
    %v135 = vunpack.c.h.b16 %v88
    %v136 = vunpack.c.l.b16 %v89
    %v137 = vunpack.c.h.b16 %v89
    %v138 = vunpack.c.l.b16 %v90
    %v139 = vunpack.c.h.b16 %v90
    %v140 = vunpack.c.l.b16 %v91
    %v141 = vunpack.c.h.b16 %v91
    %v142 = vunpack.c.l.b16 %v92
    %v143 = vunpack.c.h.b16 %v92
    %v144 = vunpack.c.l.b16 %v93
    %v145 = vunpack.c.h.b16 %v93
    %v146 = vunpack.c.l.b16 %v94
    %v147 = vunpack.c.h.b16 %v94
    %v148 = vunpack.c.l.b16 %v95
    %v149 = vunpack.c.h.b16 %v95
    %v150 = vpack.c.b16 %v120, %v118
    %v151 = vpack.c.b16 %v121, %v119
    %v152 = vpack.c.b16 %v124, %v122
    %v153 = vpack.c.b16 %v125, %v123
    %v154 = vpack.c.b16 %v128, %v126
    %v155 = vpack.c.b16 %v129, %v127
    %v156 = vpack.c.b16 %v132, %v130
    %v157 = vpack.c.b16 %v133, %v131
    %v158 = vpack.c.b16 %v136, %v134
    %v159 = vpack.c.b16 %v137, %v135
    %v160 = vpack.c.b16 %v140, %v138
    %v161 = vpack.c.b16 %v141, %v139
    %v162 = vpack.c.b16 %v144, %v142
    %v163 = vpack.c.b16 %v145, %v143
    %v164 = vpack.c.b16 %v148, %v146
    %v165 = vpack.c.b16 %v149, %v147
    %182 = vmatpush.bf16.msra.mxu0 %v164
    %183 = vmatpush.bf16.msra.mxu0 %v162
    %184 = vmatpush.bf16.msra.mxu0 %v160
    %185 = vmatpush.bf16.msra.mxu0 %v158
    %186 = vmatpush.bf16.msra.mxu0 %v156
    %187 = vmatpush.bf16.msra.mxu0 %v154
    %188 = vmatpush.bf16.msra.mxu0 %v152
    %189 = vmatpush.bf16.msra.mxu0 %v150
    %190 = vmatmul.bf16.gmra.mxu0 %v79
    %v191 = vpop.f32.mrf.mxu0
    %v192 = vadd.f32 %v98, %v191
    %v193 = vpop.f32.mrf.mxu0
    %194 = vdwg.mxu0
    %195 = vmatpush.bf16.msra.mxu0 %v165
    %196 = vmatpush.bf16.msra.mxu0 %v163
    %197 = vmatpush.bf16.msra.mxu0 %v161
    %198 = vmatpush.bf16.msra.mxu0 %v159
    %199 = vmatpush.bf16.msra.mxu0 %v157
    %200 = vmatpush.bf16.msra.mxu0 %v155
    %201 = vmatpush.bf16.msra.mxu0 %v153
    %202 = vmatpush.bf16.msra.mxu0 %v151
    %203 = vmatmul.bf16.gmra.mxu0 %v79
    %v204 = vpop.f32.mrf.mxu0
    %v205 = vadd.f32 %v99, %v204
    %v206 = vpop.f32.mrf.mxu0
    %207 = vdwg.mxu0
    %v208 = vmax.f32 %v192, 0.0
    %v209 = vmax.f32 %v205, 0.0
    %v210 = vld [vmem:[%s5] sm:$0x3]
    %v212 = vperm.slane %v210, 0
    %v213 = vperm.slane %v210, 1
    %v216 = vmul.f32 %v208, %v212
    %v217 = vmul.f32 %v209, %v213
    %v218 = vadd.f32 %v216, %v217
    %219 = vadd.xlane.f32.xlu0 %v218
    %v220 = vpop.xlane.xlu0 %219
    %s221 = sld [smem:[#allocation2]]
    %v222 = vstv %s221
    %v223 = vadd.f32 %v220, %v222
    %vm224 = vcmask 7168
    %225 = vst.msk [vmem:[%s7] sm:$0xff] %vm224, %v223
    // Predicated region
    $region34: #{tpu_custom_call.1} parent=1 // pred_check
      _
    $region35: #{tpu_custom_call.1} parent=1 // pred_check_branch
      %227 = sbr.rel (0) target = $region37
    $region36: #{tpu_custom_call.1} parent=1 // pred_region
      _
    $region37: #{tpu_custom_call.1} parent=1 // pred_fallthru
      _
    // Predicated region
    $region38: #{tpu_custom_call.1} parent=1 // pred_check
      _
    $region39: #{tpu_custom_call.1} parent=1 // pred_check_branch
      %229 = sbr.rel (0) target = $region41
    $region40: #{tpu_custom_call.1} parent=1 // pred_region
      _
    $region41: #{tpu_custom_call.1} parent=1 // pred_fallthru
      _
    %230 = vsyncpa [#allocation4], 1

</llo_original>
